<compile_context>
chip_gen: v7x
topology: tpu7x:2x2x1
jax: 0.10.0
libtpu: 0.0.40
codegen_flags: <defaults>
</compile_context>

<pallas_src>
import functools

import jax
import jax.numpy as jnp
from jax import lax
from jax.experimental import pallas as pl
from jax.experimental.pallas import tpu as pltpu


def _round_up(a: int, b: int) -> int:
    return ((a + b - 1) // b) * b


def _cdiv(a: int, b: int) -> int:
    return -(-a // b)


def _tile_and_pad(n: int, cap: int, align: int) -> tuple[int, int]:
    """Balanced ragged tiling: tile size and padded extent (tile * n_tiles)."""
    cap = max(cap, align)
    n_tiles = max(1, _cdiv(n, cap))
    tile = _round_up(_cdiv(n, n_tiles), align)
    return tile, tile * n_tiles


def _vmem_budget_bytes() -> int:
    """Per-core VMEM capacity with ~25% headroom (generation aware)."""
    cap = 64 << 20  # v7x-safe fallback
    try:
        info = pltpu.get_tpu_info()
        cap = int(getattr(info, "vmem_capacity_bytes", cap))
    except Exception:
        pass
    return (cap * 3) // 4


def _row_sq_norm_f32(a: jax.Array) -> jax.Array:
    a32 = a.astype(jnp.float32)
    return jnp.sum(a32 * a32, axis=1, keepdims=True)  # (n, 1) f32


def _xla_pairwise(x, centers, out_dtype):
    x32 = x.astype(jnp.float32)
    c32 = centers.astype(jnp.float32)
    xn = jnp.sum(x32 * x32, axis=1, keepdims=True)
    cn = jnp.sum(c32 * c32, axis=1)[None, :]
    d = xn + cn - 2.0 * jnp.dot(x32, c32.T, precision=lax.Precision.HIGHEST)
    return jnp.maximum(d, 0.0).astype(out_dtype)


# ---------------------------------------------------------------------------
# Kernels
# ---------------------------------------------------------------------------

def _resident_kernel(x_ref, xn_ref, c_ref, cn_ref, o_ref, *,
                     tn, matmul_dtype, precision):
    # x_ref : (tm, D)   batch tile of samples
    # xn_ref: (tm, 1)   precomputed ||x||^2 (f32)
    # c_ref : (Cp, D)   FULL centers, resident in VMEM (constant block index)
    # cn_ref: (1, Cp)   precomputed ||mu||^2 row (f32), resident
    # o_ref : (tm, tn)  output tile of squared distances
    j = pl.program_id(1)
    start = pl.multiple_of(j * tn, tn)           # tn is a multiple of 128
    c_tile = c_ref[pl.ds(start, tn), :]          # (tn, D)
    cn_tile = cn_ref[:, pl.ds(start, tn)]        # (1, tn)

    # Cross term on the MXU; contracting dims (1,1) == x @ c.T (rhs-transposed
    # matmul, MXU-native -- same pattern as q @ k.T in flash attention).
    xc = lax.dot_general(
        x_ref[...].astype(matmul_dtype),
        c_tile.astype(matmul_dtype),
        dimension_numbers=(((1,), (1,)), ((), ())),
        preferred_element_type=jnp.float32,
        precision=precision,
    )                                            # (tm, tn) f32

    d = xn_ref[...] + cn_tile - 2.0 * xc
    o_ref[...] = jnp.maximum(d, 0.0).astype(o_ref.dtype)


def _streamed_kernel(x_ref, xn_ref, c_ref, cn_ref, o_ref, acc_ref, *,
                     matmul_dtype, precision):
    # Grid (i, j, k): batch tile, class tile, feature (K) tile.
    # x_ref : (tm, tk), xn_ref: (tm, 1), c_ref: (tn, tk), cn_ref: (1, tn)
    # o_ref : (tm, tn), acc_ref: (tm, tn) f32 VMEM scratch (x @ c.T accumulator)
    k = pl.program_id(2)

    @pl.when(k == 0)
    def _():
        acc_ref[...] = jnp.zeros_like(acc_ref)

    acc_ref[...] += lax.dot_general(
        x_ref[...].astype(matmul_dtype),
        c_ref[...].astype(matmul_dtype),
        dimension_numbers=(((1,), (1,)), ((), ())),
        preferred_element_type=jnp.float32,
        precision=precision,
    )

    @pl.when(k == pl.num_programs(2) - 1)
    def _():
        d = xn_ref[...] + cn_ref[...] - 2.0 * acc_ref[...]
        o_ref[...] = jnp.maximum(d, 0.0).astype(o_ref.dtype)


# ---------------------------------------------------------------------------
# Wrapper
# ---------------------------------------------------------------------------

def class_centers_forward(
    x: jax.Array,
    centers: jax.Array,
    *,
    tm: int = 512,
    tn: int = 512,
    tk: int = 512,
    use_bf16_matmul: bool = False,
    out_dtype=jnp.float32,
    allow_xla_fast_path: bool = True,
    force_streamed: bool = False,
) -> jax.Array:
    """Pairwise squared-Euclidean distances of samples x (N, D) to centers (C, D).

    Returns (N, C) distances clamped at 0, matching
    pytorch_ood.utils.pairwise_distances(x, centers).
    """
    N, D = x.shape
    C, Dc = centers.shape
    assert D == Dc, "feature dimension mismatch"

    # Tiny problems: kernel launch + lane padding dominates -> plain XLA.
    if allow_xla_fast_path and (N * C * D) <= (1 << 18):
        return _xla_pairwise(x, centers, out_dtype)

    matmul_dtype = jnp.bfloat16 if use_bf16_matmul else jnp.float32
    # Pin f32 fidelity explicitly (TPU default precision may drop to bf16 passes).
    precision = (lax.Precision.DEFAULT if use_bf16_matmul
                 else lax.Precision.HIGHEST)

    budget = _vmem_budget_bytes()
    ESZ = 4  # conservative per-element byte estimate

    tm_eff, Np = _tile_and_pad(N, max(8, tm), 8)
    tn_eff, Cp = _tile_and_pad(C, max(128, tn), 128)

    # -------- resident-centers path: centers DMA'd once, never re-fetched ---
    resident_bytes = ESZ * (2 * Cp * D + 2 * Cp
                            + 2 * tm_eff * D + 2 * tm_eff
                            + 2 * tm_eff * tn_eff)
    if (not force_streamed) and resident_bytes <= budget:
        x_p = x if Np == N else jnp.pad(x, ((0, Np - N), (0, 0)))
        c_p = centers if Cp == C else jnp.pad(centers, ((0, Cp - C), (0, 0)))
        x_norm = _row_sq_norm_f32(x_p)                        # (Np, 1)
        c_norm = _row_sq_norm_f32(c_p).reshape(1, Cp)         # (1, Cp)

        kernel = functools.partial(
            _resident_kernel, tn=tn_eff,
            matmul_dtype=matmul_dtype, precision=precision)

        out_p = pl.pallas_call(
            kernel,
            out_shape=jax.ShapeDtypeStruct((Np, Cp), out_dtype),
            grid_spec=pltpu.PrefetchScalarGridSpec(
                num_scalar_prefetch=0,
                grid=(Np // tm_eff, Cp // tn_eff),
                in_specs=[
                    pl.BlockSpec((tm_eff, D), lambda i, j: (i, 0)),
                    pl.BlockSpec((tm_eff, 1), lambda i, j: (i, 0)),
                    pl.BlockSpec((Cp, D), lambda i, j: (0, 0)),   # resident
                    pl.BlockSpec((1, Cp), lambda i, j: (0, 0)),   # resident
                ],
                out_specs=pl.BlockSpec((tm_eff, tn_eff), lambda i, j: (i, j)),
            ),
            compiler_params=pltpu.CompilerParams(
                dimension_semantics=("parallel", "parallel"),
                vmem_limit_bytes=int(budget),
            ),
        )(x_p, x_norm, c_p, c_norm)
        return out_p[:N, :C]

    # -------- streamed, K-tiled path (large D and/or large C) ---------------
    tm_cap, tn_cap, tk_cap = max(8, tm), max(128, tn), max(128, tk)
    fitted = False
    for _ in range(32):
        tm_eff, Np = _tile_and_pad(N, tm_cap, 8)
        tn_eff, Cp = _tile_and_pad(C, tn_cap, 128)
        tk_eff, Dp = _tile_and_pad(D, tk_cap, 128)
        streamed_bytes = ESZ * (2 * tm_eff * tk_eff + 2 * tn_eff * tk_eff
                                + 2 * tm_eff + 2 * tn_eff
                                + 2 * tm_eff * tn_eff       # double-buffered out
                                + tm_eff * tn_eff)          # acc scratch
        if streamed_bytes <= budget:
            fitted = True
            break
        if tm_cap > 8 and tm_eff * max(tk_eff, tn_eff) >= tn_eff * tk_eff:
            tm_cap = max(8, tm_cap // 2)
        elif tn_cap > 128:
            tn_cap = max(128, tn_cap // 2)
        elif tk_cap > 128:
            tk_cap = max(128, tk_cap // 2)
        elif tm_cap > 8:
            tm_cap = max(8, tm_cap // 2)
        else:
            break
    if not fitted:
        raise ValueError("ClassCenters Pallas kernel: tiles do not fit VMEM budget")

    x_p = x if (Np == N and Dp == D) else jnp.pad(x, ((0, Np - N), (0, Dp - D)))
    c_p = (centers if (Cp == C and Dp == D)
           else jnp.pad(centers, ((0, Cp - C), (0, Dp - D))))
    x_norm = _row_sq_norm_f32(x_p)                        # (Np, 1)
    c_norm = _row_sq_norm_f32(c_p).reshape(1, Cp)         # (1, Cp)

    kernel = functools.partial(
        _streamed_kernel, matmul_dtype=matmul_dtype, precision=precision)

    out_p = pl.pallas_call(
        kernel,
        out_shape=jax.ShapeDtypeStruct((Np, Cp), out_dtype),
        grid_spec=pltpu.PrefetchScalarGridSpec(
            num_scalar_prefetch=0,
            grid=(Np // tm_eff, Cp // tn_eff, Dp // tk_eff),
            in_specs=[
                pl.BlockSpec((tm_eff, tk_eff), lambda i, j, k: (i, k)),
                pl.BlockSpec((tm_eff, 1), lambda i, j, k: (i, 0)),
                pl.BlockSpec((tn_eff, tk_eff), lambda i, j, k: (j, k)),
                pl.BlockSpec((1, tn_eff), lambda i, j, k: (0, j)),
            ],
            out_specs=pl.BlockSpec((tm_eff, tn_eff), lambda i, j, k: (i, j)),
            scratch_shapes=[pltpu.VMEM((tm_eff, tn_eff), jnp.float32)],
        ),
        compiler_params=pltpu.CompilerParams(
            dimension_semantics=("parallel", "parallel", "arbitrary"),
            vmem_limit_bytes=int(budget),
        ),
    )(x_p, x_norm, c_p, c_norm)
    return out_p[:N, :C]


# ---------------------------------------------------------------------------
# Reference + demo
# ---------------------------------------------------------------------------

def _reference(x, centers):
    x = x.astype(jnp.float32)
    centers = centers.astype(jnp.float32)
    x_norm = jnp.sum(x ** 2, axis=1, keepdims=True)
    c_norm = jnp.sum(centers ** 2, axis=1, keepdims=True).T
    d = x_norm + c_norm - 2.0 * jnp.dot(x, centers.T, precision=lax.Precision.HIGHEST)
    return jnp.maximum(d, 0.0)


if __name__ == "__main__":
    key = jax.random.PRNGKey(0)
    kx, kc, kx2, kc2, kx3, kc3 = jax.random.split(key, 6)

    # --- Module-sized config (n_classes=8, n_features=32, batch=16) --------
    # nn.Parameter(torch.zeros(...)) in __init__; use deterministic non-zero
    # values here to emulate trained centers.  Force the Pallas path so the
    # kernel itself is exercised (fast path would bypass it at this size).
    n_classes, n_features, batch = 8, 32, 16
    x = jax.random.normal(kx, (batch, n_features), dtype=jnp.float32)
    centers = jax.random.normal(kc, (n_classes, n_features), dtype=jnp.float32) * 0.5

    out = jax.block_until_ready(
        class_centers_forward(x, centers, allow_xla_fast_path=False))
    ref = _reference(x, centers)
    assert out.shape == (batch, n_classes)
    assert jnp.allclose(out, ref, atol=1e-4, rtol=1e-4), "mismatch (small)"

    # --- Ragged shapes -> resident-centers tiled path ------------------------
    N2, C2, D2 = 300, 200, 96
    x2 = jax.random.normal(kx2, (N2, D2), dtype=jnp.float32)
    c2 = jax.random.normal(kc2, (C2, D2), dtype=jnp.float32) * 0.3
    out2 = jax.block_until_ready(class_centers_forward(x2, c2, tm=256, tn=256))
    ref2 = _reference(x2, c2)
    assert out2.shape == (N2, C2)
    assert jnp.allclose(out2, ref2, atol=1e-3, rtol=1e-3), "mismatch (resident)"

    # --- Streamed K-tiled accumulator path (forced, multi-step K axis) ------
    N3, C3, D3 = 160, 130, 384
    x3 = jax.random.normal(kx3, (N3, D3), dtype=jnp.float32)
    c3 = jax.random.normal(kc3, (C3, D3), dtype=jnp.float32) * 0.3
    out3 = jax.block_until_ready(
        class_centers_forward(x3, c3, tm=128, tn=128, tk=128, force_streamed=True))
    ref3 = _reference(x3, c3)
    assert out3.shape == (N3, C3)
    assert jnp.allclose(out3, ref3, atol=1e-3, rtol=1e-3), "mismatch (streamed)"

    print("KERNEL_OK")
</pallas_src>

<mosaic_0001>
module attributes {stable_mosaic.version = 11 : i64} {
  func.func @_resident_kernel(%arg0: i32, %arg1: i32, %arg2: memref<16x32xf32, #tpu.memory_space<vmem>>, %arg3: memref<16x1xf32, #tpu.memory_space<vmem>>, %arg4: memref<128x32xf32, #tpu.memory_space<vmem>>, %arg5: memref<1x128xf32, #tpu.memory_space<vmem>>, %arg6: memref<16x128xf32, #tpu.memory_space<vmem>>) attributes {dimension_semantics = [#tpu.dimension_semantics<parallel>, #tpu.dimension_semantics<parallel>], iteration_bounds = array<i64: 1, 1>, scalar_prefetch = 0 : i64, scratch_operands = 0 : i64, tpu.core_type = #tpu.core_type<tc>, window_params = [{transform_indices = @transform_0, window_bounds = array<i64: 16, 32>}, {transform_indices = @transform_1, window_bounds = array<i64: 16, 1>}, {pipeline_mode = #tpu.pipeline_mode<synchronous>, transform_indices = @transform_2, window_bounds = array<i64: 128, 32>}, {pipeline_mode = #tpu.pipeline_mode<synchronous>, transform_indices = @transform_3, window_bounds = array<i64: 1, 128>}, {transform_indices = @transform_4, window_bounds = array<i64: 16, 128>}]} {
    %c128_i32 = arith.constant 128 : i32
    %0 = arith.muli %arg1, %c128_i32 : i32
    %1 = tpu.assume_multiple %0, 128 : i32
    %2 = arith.index_cast %1 : i32 to index
    %c0 = arith.constant 0 : index
    %3 = vector.load %arg4[%2, %c0] : memref<128x32xf32, #tpu.memory_space<vmem>>, vector<128x32xf32>
    %c0_0 = arith.constant 0 : index
    %4 = arith.index_cast %1 : i32 to index
    %5 = vector.load %arg5[%c0_0, %4] : memref<1x128xf32, #tpu.memory_space<vmem>>, vector<1x128xf32>
    %c0_1 = arith.constant 0 : index
    %c0_2 = arith.constant 0 : index
    %6 = vector.load %arg2[%c0_1, %c0_2] : memref<16x32xf32, #tpu.memory_space<vmem>>, vector<16x32xf32>
    %cst = arith.constant dense<0.000000e+00> : vector<16x128xf32>
    %7 = tpu.matmul %6, %3, %cst {dimension_numbers = #tpu.dot_dimension_numbers<[1], [1], [0], [0], [0, 0, 1, 0], [], []>, precision = #tpu.contract_precision<fp32>} : vector<16x32xf32>, vector<128x32xf32>, vector<16x128xf32> -> vector<16x128xf32>
    %c0_3 = arith.constant 0 : index
    %c0_4 = arith.constant 0 : index
    %8 = vector.load %arg3[%c0_3, %c0_4] : memref<16x1xf32, #tpu.memory_space<vmem>>, vector<16x1xf32>
    %9 = vector.broadcast %8 : vector<16x1xf32> to vector<16x128xf32>
    %10 = vector.broadcast %5 : vector<1x128xf32> to vector<16x128xf32>
    %11 = arith.addf %9, %10 : vector<16x128xf32>
    %cst_5 = arith.constant 2.000000e+00 : f32
    %12 = vector.broadcast %cst_5 : f32 to vector<16x128xf32>
    %13 = arith.mulf %12, %7 : vector<16x128xf32>
    %14 = arith.subf %11, %13 : vector<16x128xf32>
    %cst_6 = arith.constant 0.000000e+00 : f32
    %15 = vector.broadcast %cst_6 : f32 to vector<16x128xf32>
    %16 = arith.maximumf %14, %15 : vector<16x128xf32>
    %c0_7 = arith.constant 0 : index
    %c0_8 = arith.constant 0 : index
    %17 = vector.load %arg6[%c0_7, %c0_8] : memref<16x128xf32, #tpu.memory_space<vmem>>, vector<16x128xf32>
    tpu.vector_store %arg6[%c0_7, %c0_8], %16 {strides = array<i32>} : memref<16x128xf32, #tpu.memory_space<vmem>>, vector<16x128xf32>,
    return
  }
  func.func @transform_0(%arg0: i32, %arg1: i32) -> (i32, i32) {
    %c0_i32 = arith.constant 0 : i32
    %c0_i32_0 = arith.constant 0 : i32
    return %arg0, %c0_i32 : i32, i32
  }
  func.func @transform_1(%arg0: i32, %arg1: i32) -> (i32, i32) {
    %c0_i32 = arith.constant 0 : i32
    %c0_i32_0 = arith.constant 0 : i32
    return %arg0, %c0_i32 : i32, i32
  }
  func.func @transform_2(%arg0: i32, %arg1: i32) -> (i32, i32) {
    %c0_i32 = arith.constant 0 : i32
    %c0_i32_0 = arith.constant 0 : i32
    %c0_i32_1 = arith.constant 0 : i32
    return %c0_i32, %c0_i32_0 : i32, i32
  }
  func.func @transform_3(%arg0: i32, %arg1: i32) -> (i32, i32) {
    %c0_i32 = arith.constant 0 : i32
    %c0_i32_0 = arith.constant 0 : i32
    %c0_i32_1 = arith.constant 0 : i32
    return %c0_i32, %c0_i32_0 : i32, i32
  }
  func.func @transform_4(%arg0: i32, %arg1: i32) -> (i32, i32) {
    %c0_i32 = arith.constant 0 : i32
    return %arg0, %arg1 : i32, i32
  }
}

</mosaic_0001>

<llo_original>
// kernel: tpu_custom_call.1
$region0: #{tpu_custom_call.1}
  #allocation0 [shape = 'u32[]', space=smem, size = 0x4, offset = 0x4, fixed_abs, tag = 'smem constant byte address 0x4 - core index']
  #allocation1 [shape = 'u32[144,128]{1,0:T(1,128)}', space=vmem, size = 0x12000, scoped, tag = 'internal scratch']
  %s0 = inlined_call_operand.vmem [shape: f32[16,32], index: 0, kind: input, shape index: {}]
  %s1 = inlined_call_operand.vmem [shape: f32[16,1], index: 1, kind: input, shape index: {}]
  %s2 = inlined_call_operand.vmem [shape: f32[128,32], index: 2, kind: input, shape index: {}]
  %s3 = inlined_call_operand.vmem [shape: f32[1,128], index: 3, kind: input, shape index: {}]
  %s4 = inlined_call_operand.hbm [shape: f32[16,128], index: 4, kind: output, shape index: {}]
  %s5 = sld [smem:[#allocation0]]
  $region26: #{tpu_custom_call.1} parent=0
    _
  %s7 = ssub.s32 1, %s5
  %s8 = scalar_select 0, %s7, %s5
  $region1: #{tpu_custom_call.1} parent=0
    #allocation2 [shape = 'u8[8192]{0}', space=vmem, size = 0x2000, scoped, tag = 'output window, operand 0, single buffered']
    #allocation3 [shape = 's32[1]{0}', space=sflag, size = 0x4, scoped, tag = 'scoped memory for tpu_custom_call.1']
    %9 = vsyncpa [#allocation3], 0
    // Predicated region
    $region2: #{tpu_custom_call.1} parent=1 // pred_check
      _
    $region3: #{tpu_custom_call.1} parent=1 // pred_check_branch
      %11 = sbr.rel (0) target = $region5
    $region4: #{tpu_custom_call.1} parent=1 // pred_region
      _
    $region5: #{tpu_custom_call.1} parent=1 // pred_fallthru
      _
    // Predicated region
    $region6: #{tpu_custom_call.1} parent=1 // pred_check
      _
    $region7: #{tpu_custom_call.1} parent=1 // pred_check_branch
      %13 = sbr.rel (0) target = $region9
    $region8: #{tpu_custom_call.1} parent=1 // pred_region
      _
    $region9: #{tpu_custom_call.1} parent=1 // pred_fallthru
      _
    // Predicated region
    $region10: #{tpu_custom_call.1} parent=1 // pred_check
      _
    $region11: #{tpu_custom_call.1} parent=1 // pred_check_branch
      %15 = sbr.rel (0) target = $region13
    $region12: #{tpu_custom_call.1} parent=1 // pred_region
      _
    $region13: #{tpu_custom_call.1} parent=1 // pred_fallthru
      _
    // Predicated region
    $region14: #{tpu_custom_call.1} parent=1 // pred_check
      _
    $region15: #{tpu_custom_call.1} parent=1 // pred_check_branch
      %17 = sbr.rel (0) target = $region17
    $region16: #{tpu_custom_call.1} parent=1 // pred_region
      _
    $region17: #{tpu_custom_call.1} parent=1 // pred_fallthru
      _
    %s18 = smul.u32 0, 128
    %s19 = scalar_lea.vmem %s2, %s18
    %v20 = vld [vmem:[%s19] sm:$0xff]
    %v21 = vld [vmem:[%s19 + $0x8] sm:$0xff]
    %v22 = vld [vmem:[%s19 + $0x10] sm:$0xff]
    %v23 = vld [vmem:[%s19 + $0x18] sm:$0xff]
    %v24 = vld [vmem:[%s19 + $0x20] sm:$0xff]
    %v25 = vld [vmem:[%s19 + $0x28] sm:$0xff]
    %v26 = vld [vmem:[%s19 + $0x30] sm:$0xff]
    %v27 = vld [vmem:[%s19 + $0x38] sm:$0xff]
    %v28 = vld [vmem:[%s19 + $0x40] sm:$0xff]
    %v29 = vld [vmem:[%s19 + $0x48] sm:$0xff]
    %v30 = vld [vmem:[%s19 + $0x50] sm:$0xff]
    %v31 = vld [vmem:[%s19 + $0x58] sm:$0xff]
    %v32 = vld [vmem:[%s19 + $0x60] sm:$0xff]
    %v33 = vld [vmem:[%s19 + $0x68] sm:$0xff]
    %v34 = vld [vmem:[%s19 + $0x70] sm:$0xff]
    %v35 = vld [vmem:[%s19 + $0x78] sm:$0xff]
    %s36 = sshra.s32 %s18, 7
    %s37 = sand.u32 %s18, 127
    %s38 = scalar_lea.vmem %s3, %s36
    %v39 = vld [vmem:[%s38] sm:$0x1]
    %v40 = vld [vmem:[%s0] sm:$0xff]
    %v41 = vld [vmem:[%s0 + $0x8] sm:$0xff]
    %vm42 = vcmask 261120
    %v44 = vsel %vm42, %v40, 0
    %v47 = vsel %vm42, %v41, 0
    %v50 = vsel %vm42, %v20, 0
    %v53 = vsel %vm42, %v21, 0
    %v56 = vsel %vm42, %v22, 0
    %v59 = vsel %vm42, %v23, 0
    %v62 = vsel %vm42, %v24, 0
    %v65 = vsel %vm42, %v25, 0
    %v68 = vsel %vm42, %v26, 0
    %v71 = vsel %vm42, %v27, 0
    %v74 = vsel %vm42, %v28, 0
    %v77 = vsel %vm42, %v29, 0
    %v80 = vsel %vm42, %v30, 0
    %v83 = vsel %vm42, %v31, 0
    %v86 = vsel %vm42, %v32, 0
    %v89 = vsel %vm42, %v33, 0
    %v92 = vsel %vm42, %v34, 0
    %v95 = vsel %vm42, %v35, 0
    %97 = vmatprep.subr.mxu0 0.0
    %v98 = vand.u32 %v50, 4294901760
    %99 = vmatpush1.xpose.msra.mxu0 %v98
    %100 = vmatprep.subr.mxu0 0.0
    %v101 = vand.u32 %v53, 4294901760
    %102 = vmatpush1.xpose.msra.mxu0 %v101
    %103 = vmatprep.subr.mxu0 0.0
    %v104 = vand.u32 %v56, 4294901760
    %105 = vmatpush1.xpose.msra.mxu0 %v104
    %106 = vmatprep.subr.mxu0 0.0
    %v107 = vand.u32 %v59, 4294901760
    %108 = vmatpush1.xpose.msra.mxu0 %v107
    %109 = vmatprep.subr.mxu0 0.0
    %v110 = vand.u32 %v62, 4294901760
    %111 = vmatpush1.xpose.msra.mxu0 %v110
    %112 = vmatprep.subr.mxu0 0.0
    %v113 = vand.u32 %v65, 4294901760
    %114 = vmatpush1.xpose.msra.mxu0 %v113
    %115 = vmatprep.subr.mxu0 0.0
    %v116 = vand.u32 %v68, 4294901760
    %117 = vmatpush1.xpose.msra.mxu0 %v116
    %118 = vmatprep.subr.mxu0 0.0
    %v119 = vand.u32 %v71, 4294901760
    %120 = vmatpush1.xpose.msra.mxu0 %v119
    %121 = vmatprep.subr.mxu0 0.0
    %v122 = vand.u32 %v74, 4294901760
    %123 = vmatpush1.xpose.msra.mxu0 %v122
    %124 = vmatprep.subr.mxu0 0.0
    %v125 = vand.u32 %v77, 4294901760
    %126 = vmatpush1.xpose.msra.mxu0 %v125
    %127 = vmatprep.subr.mxu0 0.0
    %v128 = vand.u32 %v80, 4294901760
    %129 = vmatpush1.xpose.msra.mxu0 %v128
    %130 = vmatprep.subr.mxu0 0.0
    %v131 = vand.u32 %v83, 4294901760
    %132 = vmatpush1.xpose.msra.mxu0 %v131
    %133 = vmatprep.subr.mxu0 0.0
    %v134 = vand.u32 %v86, 4294901760
    %135 = vmatpush1.xpose.msra.mxu0 %v134
    %136 = vmatprep.subr.mxu0 0.0
    %v137 = vand.u32 %v89, 4294901760
    %138 = vmatpush1.xpose.msra.mxu0 %v137
    %139 = vmatprep.subr.mxu0 0.0
    %v140 = vand.u32 %v92, 4294901760
    %141 = vmatpush1.xpose.msra.mxu0 %v140
    %142 = vmatprep.subr.mxu0 0.0
    %v143 = vand.u32 %v95, 4294901760
    %144 = vmatpush1.xpose.msra.mxu0 %v143
    %145 = vmatprep.subr.mxu0 0.0
    %146 = vmatpush1.xpose.msra.mxu0 0.0
    %147 = vmatprep.subr.mxu0 0.0
    %148 = vmatpush1.xpose.msra.mxu0 0.0
    %149 = vmatprep.subr.mxu0 0.0
    %150 = vmatpush1.xpose.msra.mxu0 0.0
    %151 = vmatprep.subr.mxu0 0.0
    %152 = vmatpush1.xpose.msra.mxu0 0.0
    %153 = vmatprep.subr.mxu0 0.0
    %154 = vmatpush1.xpose.msra.mxu0 0.0
    %155 = vmatprep.subr.mxu0 0.0
    %156 = vmatpush1.xpose.msra.mxu0 0.0
    %157 = vmatprep.subr.mxu0 0.0
    %158 = vmatpush1.xpose.msra.mxu0 0.0
    %159 = vmatprep.subr.mxu0 0.0
    %160 = vmatpush1.xpose.msra.mxu0 0.0
    %161 = vmatprep.subr.mxu0 0.0
    %162 = vmatpush1.xpose.msra.mxu0 0.0
    %163 = vmatprep.subr.mxu0 0.0
    %164 = vmatpush1.xpose.msra.mxu0 0.0
    %165 = vmatprep.subr.mxu0 0.0
    %166 = vmatpush1.xpose.msra.mxu0 0.0
    %167 = vmatprep.subr.mxu0 0.0
    %168 = vmatpush1.xpose.msra.mxu0 0.0
    %169 = vmatprep.subr.mxu0 0.0
    %170 = vmatpush1.xpose.msra.mxu0 0.0
    %171 = vmatprep.subr.mxu0 0.0
    %172 = vmatpush1.xpose.msra.mxu0 0.0
    %173 = vmatprep.subr.mxu0 0.0
    %174 = vmatpush1.xpose.msra.mxu0 0.0
    %175 = vmatprep.subr.mxu0 0.0
    %176 = vmatpush1.xpose.msra.mxu0 0.0
    %177 = vmatprep.mubr.f32.mxu0 0.0
    %v178 = vand.u32 %v44, 4294901760
    %v179 = vsub.f32 %v44, %v178
    %v180 = vand.u32 %v179, 4294901760
    %v181 = vsub.f32 %v179, %v180
    %v182 = vand.u32 %v181, 4294901760
    %183 = vmatmul.mubr.f32.gmra.mrb[0].mxu0 %v182
    %v184 = vpop.f32.mrb[0].mxu0
    %v185 = vadd.f32 0.0, %v184
    %v186 = vpop.f32.mrb[0].mxu0
    %187 = vmatprep.mubr.f32.mxu0 0.0
    %v188 = vand.u32 %v47, 4294901760
    %v189 = vsub.f32 %v47, %v188
    %v190 = vand.u32 %v189, 4294901760
    %v191 = vsub.f32 %v189, %v190
    %v192 = vand.u32 %v191, 4294901760
    %193 = vmatmul.mubr.f32.gmra.mrb[0].mxu0 %v192
    %v194 = vpop.f32.mrb[0].mxu0
    %v195 = vadd.f32 0.0, %v194
    %v196 = vpop.f32.mrb[0].mxu0
    %197 = vdwg.mxu0
    %198 = vmatprep.subr.mxu0 0.0
    %v199 = vand.u32 %v50, 4294901760
    %v200 = vsub.f32 %v50, %v199
    %v201 = vand.u32 %v200, 4294901760
    %v202 = vsub.f32 %v200, %v201
    %v203 = vand.u32 %v202, 4294901760
    %204 = vmatpush1.xpose.msra.mxu0 %v203
    %205 = vmatprep.subr.mxu0 0.0
    %v206 = vand.u32 %v53, 4294901760
    %v207 = vsub.f32 %v53, %v206
    %v208 = vand.u32 %v207, 4294901760
    %v209 = vsub.f32 %v207, %v208
    %v210 = vand.u32 %v209, 4294901760
    %211 = vmatpush1.xpose.msra.mxu0 %v210
    %212 = vmatprep.subr.mxu0 0.0
    %v213 = vand.u32 %v56, 4294901760
    %v214 = vsub.f32 %v56, %v213
    %v215 = vand.u32 %v214, 4294901760
    %v216 = vsub.f32 %v214, %v215
    %v217 = vand.u32 %v216, 4294901760
    %218 = vmatpush1.xpose.msra.mxu0 %v217
    %219 = vmatprep.subr.mxu0 0.0
    %v220 = vand.u32 %v59, 4294901760
    %v221 = vsub.f32 %v59, %v220
    %v222 = vand.u32 %v221, 4294901760
    %v223 = vsub.f32 %v221, %v222
    %v224 = vand.u32 %v223, 4294901760
    %225 = vmatpush1.xpose.msra.mxu0 %v224
    %226 = vmatprep.subr.mxu0 0.0
    %v227 = vand.u32 %v62, 4294901760
    %v228 = vsub.f32 %v62, %v227
    %v229 = vand.u32 %v228, 4294901760
    %v230 = vsub.f32 %v228, %v229
    %v231 = vand.u32 %v230, 4294901760
    %232 = vmatpush1.xpose.msra.mxu0 %v231
    %233 = vmatprep.subr.mxu0 0.0
    %v234 = vand.u32 %v65, 4294901760
    %v235 = vsub.f32 %v65, %v234
    %v236 = vand.u32 %v235, 4294901760
    %v237 = vsub.f32 %v235, %v236
    %v238 = vand.u32 %v237, 4294901760
    %239 = vmatpush1.xpose.msra.mxu0 %v238
    %240 = vmatprep.subr.mxu0 0.0
    %v241 = vand.u32 %v68, 4294901760
    %v242 = vsub.f32 %v68, %v241
    %v243 = vand.u32 %v242, 4294901760
    %v244 = vsub.f32 %v242, %v243
    %v245 = vand.u32 %v244, 4294901760
    %246 = vmatpush1.xpose.msra.mxu0 %v245
    %247 = vmatprep.subr.mxu0 0.0
    %v248 = vand.u32 %v71, 4294901760
    %v249 = vsub.f32 %v71, %v248
    %v250 = vand.u32 %v249, 4294901760
    %v251 = vsub.f32 %v249, %v250
    %v252 = vand.u32 %v251, 4294901760
    %253 = vmatpush1.xpose.msra.mxu0 %v252
    %254 = vmatprep.subr.mxu0 0.0
    %v255 = vand.u32 %v74, 4294901760
    %v256 = vsub.f32 %v74, %v255
    %v257 = vand.u32 %v256, 4294901760
    %v258 = vsub.f32 %v256, %v257
    %v259 = vand.u32 %v258, 4294901760
    %260 = vmatpush1.xpose.msra.mxu0 %v259
    %261 = vmatprep.subr.mxu0 0.0
    %v262 = vand.u32 %v77, 4294901760
    %v263 = vsub.f32 %v77, %v262
    %v264 = vand.u32 %v263, 4294901760
    %v265 = vsub.f32 %v263, %v264
    %v266 = vand.u32 %v265, 4294901760
    %267 = vmatpush1.xpose.msra.mxu0 %v266
    %268 = vmatprep.subr.mxu0 0.0
    %v269 = vand.u32 %v80, 4294901760
    %v270 = vsub.f32 %v80, %v269
    %v271 = vand.u32 %v270, 4294901760
    %v272 = vsub.f32 %v270, %v271
    %v273 = vand.u32 %v272, 4294901760
    %274 = vmatpush1.xpose.msra.mxu0 %v273
    %275 = vmatprep.subr.mxu0 0.0
    %v276 = vand.u32 %v83, 4294901760
    %v277 = vsub.f32 %v83, %v276
    %v278 = vand.u32 %v277, 4294901760
    %v279 = vsub.f32 %v277, %v278
    %v280 = vand.u32 %v279, 4294901760
    %281 = vmatpush1.xpose.msra.mxu0 %v280
    %282 = vmatprep.subr.mxu0 0.0
    %v283 = vand.u32 %v86, 4294901760
    %v284 = vsub.f32 %v86, %v283
    %v285 = vand.u32 %v284, 4294901760
    %v286 = vsub.f32 %v284, %v285
    %v287 = vand.u32 %v286, 4294901760
    %288 = vmatpush1.xpose.msra.mxu0 %v287
    %289 = vmatprep.subr.mxu0 0.0
    %v290 = vand.u32 %v89, 4294901760
    %v291 = vsub.f32 %v89, %v290
    %v292 = vand.u32 %v291, 4294901760
    %v293 = vsub.f32 %v291, %v292
    %v294 = vand.u32 %v293, 4294901760
    %295 = vmatpush1.xpose.msra.mxu0 %v294
    %296 = vmatprep.subr.mxu0 0.0
    %v297 = vand.u32 %v92, 4294901760
    %v298 = vsub.f32 %v92, %v297
    %v299 = vand.u32 %v298, 4294901760
    %v300 = vsub.f32 %v298, %v299
    %v301 = vand.u32 %v300, 4294901760
    %302 = vmatpush1.xpose.msra.mxu0 %v301
    %303 = vmatprep.subr.mxu0 0.0
    %v304 = vand.u32 %v95, 4294901760
    %v305 = vsub.f32 %v95, %v304
    %v306 = vand.u32 %v305, 4294901760
    %v307 = vsub.f32 %v305, %v306
    %v308 = vand.u32 %v307, 4294901760
    %309 = vmatpush1.xpose.msra.mxu0 %v308
    %310 = vmatprep.subr.mxu0 0.0
    %311 = vmatpush1.xpose.msra.mxu0 0.0
    %312 = vmatprep.subr.mxu0 0.0
    %313 = vmatpush1.xpose.msra.mxu0 0.0
    %314 = vmatprep.subr.mxu0 0.0
    %315 = vmatpush1.xpose.msra.mxu0 0.0
    %316 = vmatprep.subr.mxu0 0.0
    %317 = vmatpush1.xpose.msra.mxu0 0.0
    %318 = vmatprep.subr.mxu0 0.0
    %319 = vmatpush1.xpose.msra.mxu0 0.0
    %320 = vmatprep.subr.mxu0 0.0
    %321 = vmatpush1.xpose.msra.mxu0 0.0
    %322 = vmatprep.subr.mxu0 0.0
    %323 = vmatpush1.xpose.msra.mxu0 0.0
    %324 = vmatprep.subr.mxu0 0.0
    %325 = vmatpush1.xpose.msra.mxu0 0.0
    %326 = vmatprep.subr.mxu0 0.0
    %327 = vmatpush1.xpose.msra.mxu0 0.0
    %328 = vmatprep.subr.mxu0 0.0
    %329 = vmatpush1.xpose.msra.mxu0 0.0
    %330 = vmatprep.subr.mxu0 0.0
    %331 = vmatpush1.xpose.msra.mxu0 0.0
    %332 = vmatprep.subr.mxu0 0.0
    %333 = vmatpush1.xpose.msra.mxu0 0.0
    %334 = vmatprep.subr.mxu0 0.0
    %335 = vmatpush1.xpose.msra.mxu0 0.0
    %336 = vmatprep.subr.mxu0 0.0
    %337 = vmatpush1.xpose.msra.mxu0 0.0
    %338 = vmatprep.subr.mxu0 0.0
    %339 = vmatpush1.xpose.msra.mxu0 0.0
    %340 = vmatprep.subr.mxu0 0.0
    %341 = vmatpush1.xpose.msra.mxu0 0.0
    %342 = vmatprep.mubr.f32.mxu0 0.0
    %v343 = vand.u32 %v44, 4294901760
    %344 = vmatmul.mubr.f32.gmra.mrb[0].mxu0 %v343
    %v345 = vpop.f32.mrb[0].mxu0
    %v346 = vadd.f32 %v185, %v345
    %v347 = vpop.f32.mrb[0].mxu0
    %348 = vmatprep.mubr.f32.mxu0 0.0
    %v349 = vand.u32 %v47, 4294901760
    %350 = vmatmul.mubr.f32.gmra.mrb[0].mxu0 %v349
    %v351 = vpop.f32.mrb[0].mxu0
    %v352 = vadd.f32 %v195, %v351
    %v353 = vpop.f32.mrb[0].mxu0
    %354 = vdwg.mxu0
    %355 = vmatprep.subr.mxu0 0.0
    %v356 = vand.u32 %v50, 4294901760
    %v357 = vsub.f32 %v50, %v356
    %358 = vmatpush1.xpose.msra.mxu0 %v357
    %359 = vmatprep.subr.mxu0 0.0
    %v360 = vand.u32 %v53, 4294901760
    %v361 = vsub.f32 %v53, %v360
    %362 = vmatpush1.xpose.msra.mxu0 %v361
    %363 = vmatprep.subr.mxu0 0.0
    %v364 = vand.u32 %v56, 4294901760
    %v365 = vsub.f32 %v56, %v364
    %366 = vmatpush1.xpose.msra.mxu0 %v365
    %367 = vmatprep.subr.mxu0 0.0
    %v368 = vand.u32 %v59, 4294901760
    %v369 = vsub.f32 %v59, %v368
    %370 = vmatpush1.xpose.msra.mxu0 %v369
    %371 = vmatprep.subr.mxu0 0.0
    %v372 = vand.u32 %v62, 4294901760
    %v373 = vsub.f32 %v62, %v372
    %374 = vmatpush1.xpose.msra.mxu0 %v373
    %375 = vmatprep.subr.mxu0 0.0
    %v376 = vand.u32 %v65, 4294901760
    %v377 = vsub.f32 %v65, %v376
    %378 = vmatpush1.xpose.msra.mxu0 %v377
    %379 = vmatprep.subr.mxu0 0.0
    %v380 = vand.u32 %v68, 4294901760
    %v381 = vsub.f32 %v68, %v380
    %382 = vmatpush1.xpose.msra.mxu0 %v381
    %383 = vmatprep.subr.mxu0 0.0
    %v384 = vand.u32 %v71, 4294901760
    %v385 = vsub.f32 %v71, %v384
    %386 = vmatpush1.xpose.msra.mxu0 %v385
    %387 = vmatprep.subr.mxu0 0.0
    %v388 = vand.u32 %v74, 4294901760
    %v389 = vsub.f32 %v74, %v388
    %390 = vmatpush1.xpose.msra.mxu0 %v389
    %391 = vmatprep.subr.mxu0 0.0
    %v392 = vand.u32 %v77, 4294901760
    %v393 = vsub.f32 %v77, %v392
    %394 = vmatpush1.xpose.msra.mxu0 %v393
    %395 = vmatprep.subr.mxu0 0.0
    %v396 = vand.u32 %v80, 4294901760
    %v397 = vsub.f32 %v80, %v396
    %398 = vmatpush1.xpose.msra.mxu0 %v397
    %399 = vmatprep.subr.mxu0 0.0
    %v400 = vand.u32 %v83, 4294901760
    %v401 = vsub.f32 %v83, %v400
    %402 = vmatpush1.xpose.msra.mxu0 %v401
    %403 = vmatprep.subr.mxu0 0.0
    %v404 = vand.u32 %v86, 4294901760
    %v405 = vsub.f32 %v86, %v404
    %406 = vmatpush1.xpose.msra.mxu0 %v405
    %407 = vmatprep.subr.mxu0 0.0
    %v408 = vand.u32 %v89, 4294901760
    %v409 = vsub.f32 %v89, %v408
    %410 = vmatpush1.xpose.msra.mxu0 %v409
    %411 = vmatprep.subr.mxu0 0.0
    %v412 = vand.u32 %v92, 4294901760
    %v413 = vsub.f32 %v92, %v412
    %414 = vmatpush1.xpose.msra.mxu0 %v413
    %415 = vmatprep.subr.mxu0 0.0
    %v416 = vand.u32 %v95, 4294901760
    %v417 = vsub.f32 %v95, %v416
    %418 = vmatpush1.xpose.msra.mxu0 %v417
    %419 = vmatprep.subr.mxu0 0.0
    %420 = vmatpush1.xpose.msra.mxu0 0.0
    %421 = vmatprep.subr.mxu0 0.0
    %422 = vmatpush1.xpose.msra.mxu0 0.0
    %423 = vmatprep.subr.mxu0 0.0
    %424 = vmatpush1.xpose.msra.mxu0 0.0
    %425 = vmatprep.subr.mxu0 0.0
    %426 = vmatpush1.xpose.msra.mxu0 0.0
    %427 = vmatprep.subr.mxu0 0.0
    %428 = vmatpush1.xpose.msra.mxu0 0.0
    %429 = vmatprep.subr.mxu0 0.0
    %430 = vmatpush1.xpose.msra.mxu0 0.0
    %431 = vmatprep.subr.mxu0 0.0
    %432 = vmatpush1.xpose.msra.mxu0 0.0
    %433 = vmatprep.subr.mxu0 0.0
    %434 = vmatpush1.xpose.msra.mxu0 0.0
    %435 = vmatprep.subr.mxu0 0.0
    %436 = vmatpush1.xpose.msra.mxu0 0.0
    %437 = vmatprep.subr.mxu0 0.0
    %438 = vmatpush1.xpose.msra.mxu0 0.0
    %439 = vmatprep.subr.mxu0 0.0
    %440 = vmatpush1.xpose.msra.mxu0 0.0
    %441 = vmatprep.subr.mxu0 0.0
    %442 = vmatpush1.xpose.msra.mxu0 0.0
    %443 = vmatprep.subr.mxu0 0.0
    %444 = vmatpush1.xpose.msra.mxu0 0.0
    %445 = vmatprep.subr.mxu0 0.0
    %446 = vmatpush1.xpose.msra.mxu0 0.0
    %447 = vmatprep.subr.mxu0 0.0
    %448 = vmatpush1.xpose.msra.mxu0 0.0
    %449 = vmatprep.subr.mxu0 0.0
    %450 = vmatpush1.xpose.msra.mxu0 0.0
    %451 = vmatprep.mubr.f32.mxu0 0.0
    %v452 = vand.u32 %v44, 4294901760
    %v453 = vsub.f32 %v44, %v452
    %454 = vmatmul.mubr.f32.gmra.mrb[0].mxu0 %v453
    %v455 = vpop.f32.mrb[0].mxu0
    %v456 = vadd.f32 %v346, %v455
    %v457 = vpop.f32.mrb[0].mxu0
    %458 = vmatprep.mubr.f32.mxu0 0.0
    %v459 = vand.u32 %v47, 4294901760
    %v460 = vsub.f32 %v47, %v459
    %461 = vmatmul.mubr.f32.gmra.mrb[0].mxu0 %v460
    %v462 = vpop.f32.mrb[0].mxu0
    %v463 = vadd.f32 %v352, %v462
    %v464 = vpop.f32.mrb[0].mxu0
    %465 = vdwg.mxu0
    %466 = vmatprep.subr.mxu0 0.0
    %v467 = vand.u32 %v50, 4294901760
    %468 = vmatpush1.xpose.msra.mxu0 %v467
    %469 = vmatprep.subr.mxu0 0.0
    %v470 = vand.u32 %v53, 4294901760
    %471 = vmatpush1.xpose.msra.mxu0 %v470
    %472 = vmatprep.subr.mxu0 0.0
    %v473 = vand.u32 %v56, 4294901760
    %474 = vmatpush1.xpose.msra.mxu0 %v473
    %475 = vmatprep.subr.mxu0 0.0
    %v476 = vand.u32 %v59, 4294901760
    %477 = vmatpush1.xpose.msra.mxu0 %v476
    %478 = vmatprep.subr.mxu0 0.0
    %v479 = vand.u32 %v62, 4294901760
    %480 = vmatpush1.xpose.msra.mxu0 %v479
    %481 = vmatprep.subr.mxu0 0.0
    %v482 = vand.u32 %v65, 4294901760
    %483 = vmatpush1.xpose.msra.mxu0 %v482
    %484 = vmatprep.subr.mxu0 0.0
    %v485 = vand.u32 %v68, 4294901760
    %486 = vmatpush1.xpose.msra.mxu0 %v485
    %487 = vmatprep.subr.mxu0 0.0
    %v488 = vand.u32 %v71, 4294901760
    %489 = vmatpush1.xpose.msra.mxu0 %v488
    %490 = vmatprep.subr.mxu0 0.0
    %v491 = vand.u32 %v74, 4294901760
    %492 = vmatpush1.xpose.msra.mxu0 %v491
    %493 = vmatprep.subr.mxu0 0.0
    %v494 = vand.u32 %v77, 4294901760
    %495 = vmatpush1.xpose.msra.mxu0 %v494
    %496 = vmatprep.subr.mxu0 0.0
    %v497 = vand.u32 %v80, 4294901760
    %498 = vmatpush1.xpose.msra.mxu0 %v497
    %499 = vmatprep.subr.mxu0 0.0
    %v500 = vand.u32 %v83, 4294901760
    %501 = vmatpush1.xpose.msra.mxu0 %v500
    %502 = vmatprep.subr.mxu0 0.0
    %v503 = vand.u32 %v86, 4294901760
    %504 = vmatpush1.xpose.msra.mxu0 %v503
    %505 = vmatprep.subr.mxu0 0.0
    %v506 = vand.u32 %v89, 4294901760
    %507 = vmatpush1.xpose.msra.mxu0 %v506
    %508 = vmatprep.subr.mxu0 0.0
    %v509 = vand.u32 %v92, 4294901760
    %510 = vmatpush1.xpose.msra.mxu0 %v509
    %511 = vmatprep.subr.mxu0 0.0
    %v512 = vand.u32 %v95, 4294901760
    %513 = vmatpush1.xpose.msra.mxu0 %v512
    %514 = vmatprep.subr.mxu0 0.0
    %515 = vmatpush1.xpose.msra.mxu0 0.0
    %516 = vmatprep.subr.mxu0 0.0
    %517 = vmatpush1.xpose.msra.mxu0 0.0
    %518 = vmatprep.subr.mxu0 0.0
    %519 = vmatpush1.xpose.msra.mxu0 0.0
    %520 = vmatprep.subr.mxu0 0.0
    %521 = vmatpush1.xpose.msra.mxu0 0.0
    %522 = vmatprep.subr.mxu0 0.0
    %523 = vmatpush1.xpose.msra.mxu0 0.0
    %524 = vmatprep.subr.mxu0 0.0
    %525 = vmatpush1.xpose.msra.mxu0 0.0
    %526 = vmatprep.subr.mxu0 0.0
    %527 = vmatpush1.xpose.msra.mxu0 0.0
    %528 = vmatprep.subr.mxu0 0.0
    %529 = vmatpush1.xpose.msra.mxu0 0.0
    %530 = vmatprep.subr.mxu0 0.0
    %531 = vmatpush1.xpose.msra.mxu0 0.0
    %532 = vmatprep.subr.mxu0 0.0
    %533 = vmatpush1.xpose.msra.mxu0 0.0
    %534 = vmatprep.subr.mxu0 0.0
    %535 = vmatpush1.xpose.msra.mxu0 0.0
    %536 = vmatprep.subr.mxu0 0.0
    %537 = vmatpush1.xpose.msra.mxu0 0.0
    %538 = vmatprep.subr.mxu0 0.0
    %539 = vmatpush1.xpose.msra.mxu0 0.0
    %540 = vmatprep.subr.mxu0 0.0
    %541 = vmatpush1.xpose.msra.mxu0 0.0
    %542 = vmatprep.subr.mxu0 0.0
    %543 = vmatpush1.xpose.msra.mxu0 0.0
    %544 = vmatprep.subr.mxu0 0.0
    %545 = vmatpush1.xpose.msra.mxu0 0.0
    %546 = vmatprep.mubr.f32.mxu0 0.0
    %v547 = vand.u32 %v44, 4294901760
    %v548 = vsub.f32 %v44, %v547
    %v549 = vand.u32 %v548, 4294901760
    %550 = vmatmul.mubr.f32.gmra.mrb[0].mxu0 %v549
    %v551 = vpop.f32.mrb[0].mxu0
    %v552 = vadd.f32 %v456, %v551
    %v553 = vpop.f32.mrb[0].mxu0
    %554 = vmatprep.mubr.f32.mxu0 0.0
    %v555 = vand.u32 %v47, 4294901760
    %v556 = vsub.f32 %v47, %v555
    %v557 = vand.u32 %v556, 4294901760
    %558 = vmatmul.mubr.f32.gmra.mrb[0].mxu0 %v557
    %v559 = vpop.f32.mrb[0].mxu0
    %v560 = vadd.f32 %v463, %v559
    %v561 = vpop.f32.mrb[0].mxu0
    %562 = vdwg.mxu0
    %563 = vmatprep.subr.mxu0 0.0
    %v564 = vand.u32 %v50, 4294901760
    %v565 = vsub.f32 %v50, %v564
    %v566 = vand.u32 %v565, 4294901760
    %567 = vmatpush1.xpose.msra.mxu0 %v566
    %568 = vmatprep.subr.mxu0 0.0
    %v569 = vand.u32 %v53, 4294901760
    %v570 = vsub.f32 %v53, %v569
    %v571 = vand.u32 %v570, 4294901760
    %572 = vmatpush1.xpose.msra.mxu0 %v571
    %573 = vmatprep.subr.mxu0 0.0
    %v574 = vand.u32 %v56, 4294901760
    %v575 = vsub.f32 %v56, %v574
    %v576 = vand.u32 %v575, 4294901760
    %577 = vmatpush1.xpose.msra.mxu0 %v576
    %578 = vmatprep.subr.mxu0 0.0
    %v579 = vand.u32 %v59, 4294901760
    %v580 = vsub.f32 %v59, %v579
    %v581 = vand.u32 %v580, 4294901760
    %582 = vmatpush1.xpose.msra.mxu0 %v581
    %583 = vmatprep.subr.mxu0 0.0
    %v584 = vand.u32 %v62, 4294901760
    %v585 = vsub.f32 %v62, %v584
    %v586 = vand.u32 %v585, 4294901760
    %587 = vmatpush1.xpose.msra.mxu0 %v586
    %588 = vmatprep.subr.mxu0 0.0
    %v589 = vand.u32 %v65, 4294901760
    %v590 = vsub.f32 %v65, %v589
    %v591 = vand.u32 %v590, 4294901760
    %592 = vmatpush1.xpose.msra.mxu0 %v591
    %593 = vmatprep.subr.mxu0 0.0
    %v594 = vand.u32 %v68, 4294901760
    %v595 = vsub.f32 %v68, %v594
    %v596 = vand.u32 %v595, 4294901760
    %597 = vmatpush1.xpose.msra.mxu0 %v596
    %598 = vmatprep.subr.mxu0 0.0
    %v599 = vand.u32 %v71, 4294901760
    %v600 = vsub.f32 %v71, %v599
    %v601 = vand.u32 %v600, 4294901760
    %602 = vmatpush1.xpose.msra.mxu0 %v601
    %603 = vmatprep.subr.mxu0 0.0
    %v604 = vand.u32 %v74, 4294901760
    %v605 = vsub.f32 %v74, %v604
    %v606 = vand.u32 %v605, 4294901760
    %607 = vmatpush1.xpose.msra.mxu0 %v606
    %608 = vmatprep.subr.mxu0 0.0
    %v609 = vand.u32 %v77, 4294901760
    %v610 = vsub.f32 %v77, %v609
    %v611 = vand.u32 %v610, 4294901760
    %612 = vmatpush1.xpose.msra.mxu0 %v611
    %613 = vmatprep.subr.mxu0 0.0
    %v614 = vand.u32 %v80, 4294901760
    %v615 = vsub.f32 %v80, %v614
    %v616 = vand.u32 %v615, 4294901760
    %617 = vmatpush1.xpose.msra.mxu0 %v616
    %618 = vmatprep.subr.mxu0 0.0
    %v619 = vand.u32 %v83, 4294901760
    %v620 = vsub.f32 %v83, %v619
    %v621 = vand.u32 %v620, 4294901760
    %622 = vmatpush1.xpose.msra.mxu0 %v621
    %623 = vmatprep.subr.mxu0 0.0
    %v624 = vand.u32 %v86, 4294901760
    %v625 = vsub.f32 %v86, %v624
    %v626 = vand.u32 %v625, 4294901760
    %627 = vmatpush1.xpose.msra.mxu0 %v626
    %628 = vmatprep.subr.mxu0 0.0
    %v629 = vand.u32 %v89, 4294901760
    %v630 = vsub.f32 %v89, %v629
    %v631 = vand.u32 %v630, 4294901760
    %632 = vmatpush1.xpose.msra.mxu0 %v631
    %633 = vmatprep.subr.mxu0 0.0
    %v634 = vand.u32 %v92, 4294901760
    %v635 = vsub.f32 %v92, %v634
    %v636 = vand.u32 %v635, 4294901760
    %637 = vmatpush1.xpose.msra.mxu0 %v636
    %638 = vmatprep.subr.mxu0 0.0
    %v639 = vand.u32 %v95, 4294901760
    %v640 = vsub.f32 %v95, %v639
    %v641 = vand.u32 %v640, 4294901760
    %642 = vmatpush1.xpose.msra.mxu0 %v641
    %643 = vmatprep.subr.mxu0 0.0
    %644 = vmatpush1.xpose.msra.mxu0 0.0
    %645 = vmatprep.subr.mxu0 0.0
    %646 = vmatpush1.xpose.msra.mxu0 0.0
    %647 = vmatprep.subr.mxu0 0.0
    %648 = vmatpush1.xpose.msra.mxu0 0.0
    %649 = vmatprep.subr.mxu0 0.0
    %650 = vmatpush1.xpose.msra.mxu0 0.0
    %651 = vmatprep.subr.mxu0 0.0
    %652 = vmatpush1.xpose.msra.mxu0 0.0
    %653 = vmatprep.subr.mxu0 0.0
    %654 = vmatpush1.xpose.msra.mxu0 0.0
    %655 = vmatprep.subr.mxu0 0.0
    %656 = vmatpush1.xpose.msra.mxu0 0.0
    %657 = vmatprep.subr.mxu0 0.0
    %658 = vmatpush1.xpose.msra.mxu0 0.0
    %659 = vmatprep.subr.mxu0 0.0
    %660 = vmatpush1.xpose.msra.mxu0 0.0
    %661 = vmatprep.subr.mxu0 0.0
    %662 = vmatpush1.xpose.msra.mxu0 0.0
    %663 = vmatprep.subr.mxu0 0.0
    %664 = vmatpush1.xpose.msra.mxu0 0.0
    %665 = vmatprep.subr.mxu0 0.0
    %666 = vmatpush1.xpose.msra.mxu0 0.0
    %667 = vmatprep.subr.mxu0 0.0
    %668 = vmatpush1.xpose.msra.mxu0 0.0
    %669 = vmatprep.subr.mxu0 0.0
    %670 = vmatpush1.xpose.msra.mxu0 0.0
    %671 = vmatprep.subr.mxu0 0.0
    %672 = vmatpush1.xpose.msra.mxu0 0.0
    %673 = vmatprep.subr.mxu0 0.0
    %674 = vmatpush1.xpose.msra.mxu0 0.0
    %675 = vmatprep.mubr.f32.mxu0 0.0
    %v676 = vand.u32 %v44, 4294901760
    %677 = vmatmul.mubr.f32.gmra.mrb[0].mxu0 %v676
    %v678 = vpop.f32.mrb[0].mxu0
    %v679 = vadd.f32 %v552, %v678
    %v680 = vpop.f32.mrb[0].mxu0
    %681 = vmatprep.mubr.f32.mxu0 0.0
    %v682 = vand.u32 %v47, 4294901760
    %683 = vmatmul.mubr.f32.gmra.mrb[0].mxu0 %v682
    %v684 = vpop.f32.mrb[0].mxu0
    %v685 = vadd.f32 %v560, %v684
    %v686 = vpop.f32.mrb[0].mxu0
    %687 = vdwg.mxu0
    %688 = vmatprep.subr.mxu0 0.0
    %v689 = vand.u32 %v50, 4294901760
    %690 = vmatpush1.xpose.msra.mxu0 %v689
    %691 = vmatprep.subr.mxu0 0.0
    %v692 = vand.u32 %v53, 4294901760
    %693 = vmatpush1.xpose.msra.mxu0 %v692
    %694 = vmatprep.subr.mxu0 0.0
    %v695 = vand.u32 %v56, 4294901760
    %696 = vmatpush1.xpose.msra.mxu0 %v695
    %697 = vmatprep.subr.mxu0 0.0
    %v698 = vand.u32 %v59, 4294901760
    %699 = vmatpush1.xpose.msra.mxu0 %v698
    %700 = vmatprep.subr.mxu0 0.0
    %v701 = vand.u32 %v62, 4294901760
    %702 = vmatpush1.xpose.msra.mxu0 %v701
    %703 = vmatprep.subr.mxu0 0.0
    %v704 = vand.u32 %v65, 4294901760
    %705 = vmatpush1.xpose.msra.mxu0 %v704
    %706 = vmatprep.subr.mxu0 0.0
    %v707 = vand.u32 %v68, 4294901760
    %708 = vmatpush1.xpose.msra.mxu0 %v707
    %709 = vmatprep.subr.mxu0 0.0
    %v710 = vand.u32 %v71, 4294901760
    %711 = vmatpush1.xpose.msra.mxu0 %v710
    %712 = vmatprep.subr.mxu0 0.0
    %v713 = vand.u32 %v74, 4294901760
    %714 = vmatpush1.xpose.msra.mxu0 %v713
    %715 = vmatprep.subr.mxu0 0.0
    %v716 = vand.u32 %v77, 4294901760
    %717 = vmatpush1.xpose.msra.mxu0 %v716
    %718 = vmatprep.subr.mxu0 0.0
    %v719 = vand.u32 %v80, 4294901760
    %720 = vmatpush1.xpose.msra.mxu0 %v719
    %721 = vmatprep.subr.mxu0 0.0
    %v722 = vand.u32 %v83, 4294901760
    %723 = vmatpush1.xpose.msra.mxu0 %v722
    %724 = vmatprep.subr.mxu0 0.0
    %v725 = vand.u32 %v86, 4294901760
    %726 = vmatpush1.xpose.msra.mxu0 %v725
    %727 = vmatprep.subr.mxu0 0.0
    %v728 = vand.u32 %v89, 4294901760
    %729 = vmatpush1.xpose.msra.mxu0 %v728
    %730 = vmatprep.subr.mxu0 0.0
    %v731 = vand.u32 %v92, 4294901760
    %732 = vmatpush1.xpose.msra.mxu0 %v731
    %733 = vmatprep.subr.mxu0 0.0
    %v734 = vand.u32 %v95, 4294901760
    %735 = vmatpush1.xpose.msra.mxu0 %v734
    %736 = vmatprep.subr.mxu0 0.0
    %737 = vmatpush1.xpose.msra.mxu0 0.0
    %738 = vmatprep.subr.mxu0 0.0
    %739 = vmatpush1.xpose.msra.mxu0 0.0
    %740 = vmatprep.subr.mxu0 0.0
    %741 = vmatpush1.xpose.msra.mxu0 0.0
    %742 = vmatprep.subr.mxu0 0.0
    %743 = vmatpush1.xpose.msra.mxu0 0.0
    %744 = vmatprep.subr.mxu0 0.0
    %745 = vmatpush1.xpose.msra.mxu0 0.0
    %746 = vmatprep.subr.mxu0 0.0
    %747 = vmatpush1.xpose.msra.mxu0 0.0
    %748 = vmatprep.subr.mxu0 0.0
    %749 = vmatpush1.xpose.msra.mxu0 0.0
    %750 = vmatprep.subr.mxu0 0.0
    %751 = vmatpush1.xpose.msra.mxu0 0.0
    %752 = vmatprep.subr.mxu0 0.0
    %753 = vmatpush1.xpose.msra.mxu0 0.0
    %754 = vmatprep.subr.mxu0 0.0
    %755 = vmatpush1.xpose.msra.mxu0 0.0
    %756 = vmatprep.subr.mxu0 0.0
    %757 = vmatpush1.xpose.msra.mxu0 0.0
    %758 = vmatprep.subr.mxu0 0.0
    %759 = vmatpush1.xpose.msra.mxu0 0.0
    %760 = vmatprep.subr.mxu0 0.0
    %761 = vmatpush1.xpose.msra.mxu0 0.0
    %762 = vmatprep.subr.mxu0 0.0
    %763 = vmatpush1.xpose.msra.mxu0 0.0
    %764 = vmatprep.subr.mxu0 0.0
    %765 = vmatpush1.xpose.msra.mxu0 0.0
    %766 = vmatprep.subr.mxu0 0.0
    %767 = vmatpush1.xpose.msra.mxu0 0.0
    %768 = vmatprep.mubr.f32.mxu0 0.0
    %v769 = vand.u32 %v44, 4294901760
    %770 = vmatmul.mubr.f32.gmra.mrb[0].mxu0 %v769
    %v771 = vpop.f32.mrb[0].mxu0
    %v772 = vadd.f32 %v679, %v771
    %v773 = vpop.f32.mrb[0].mxu0
    %774 = vmatprep.mubr.f32.mxu0 0.0
    %v775 = vand.u32 %v47, 4294901760
    %776 = vmatmul.mubr.f32.gmra.mrb[0].mxu0 %v775
    %v777 = vpop.f32.mrb[0].mxu0
    %v778 = vadd.f32 %v685, %v777
    %v779 = vpop.f32.mrb[0].mxu0
    %780 = vdwg.mxu0
    %v781 = vld [vmem:[%s1] sm:$0xff]
    %v782 = vld [vmem:[%s1 + $0x8] sm:$0xff]
    %784 = vset.pattern.permute.xlu0 0
    %785 = vperm.xlu0 %784, %v781
    %v786 = vpop.permute.xlu0 %785
    %789 = vset.pattern.permute.xlu0 0
    %790 = vperm.xlu0 %789, %v782
    %v791 = vpop.permute.xlu0 %790
    %v794 = vlaneseq
    %v795 = vshrl.u32 %v794, 7
    %v796 = vsub.s32 0, %v795
    %v797 = vrot.slane %v39, %v796
    %v799 = vadd.f32 %v786, %v797
    %v800 = vadd.f32 %v791, %v797
    %v801 = vmul.f32 %v772, 2.0
    %v802 = vmul.f32 %v778, 2.0
    %v803 = vsub.f32 %v799, %v801
    %v804 = vsub.f32 %v800, %v802
    %v805 = vmax.f32 %v803, 0.0
    %v806 = vmax.f32 %v804, 0.0
    %807 = vst [vmem:[#allocation2] sm:$0xff] %v805
    %808 = vst [vmem:[#allocation2 + $0x8] sm:$0xff] %v806
    // Predicated region
    $region18: #{tpu_custom_call.1} parent=1 // pred_check
      _
    $region19: #{tpu_custom_call.1} parent=1 // pred_check_branch
      %810 = sbr.rel (0) target = $region21
    $region20: #{tpu_custom_call.1} parent=1 // pred_region
      %s812 = ssub.s32 256, 256
      %813 = vsyncadd [#allocation3], %s812
      %s814 = sshll.u32 [#allocation2], 4
      %s815 = int_to_ptr.vmem [resolvable:$true] %s814
      %820 = dma.vmem_to_hbm [thread:$0]  %s815, 256, %s4, [#allocation3], 128, 128, 8
    $region21: #{tpu_custom_call.1} parent=1 // pred_fallthru
      _
    // Predicated region
    $region22: #{tpu_custom_call.1} parent=1 // pred_check
      _
    $region23: #{tpu_custom_call.1} parent=1 // pred_check_branch
      %822 = sbr.rel (0) target = $region25
    $region24: #{tpu_custom_call.1} parent=1 // pred_region
      %823 = dma.done [#allocation3], 256
    $region25: #{tpu_custom_call.1} parent=1 // pred_fallthru
      _
    %824 = vsyncpa [#allocation3], 1

</llo_original>
